<compile_context>
chip_gen: v7x
topology: tpu7x:2x2x1
jax: 0.10.0
libtpu: 0.0.40
codegen_flags: <defaults>
</compile_context>

<pallas_src>
import functools

import jax
import jax.numpy as jnp
from jax.experimental import pallas as pl
from jax.experimental.pallas import tpu as pltpu


def _make_discriminator_kernel(final_reduction: bool):
    """Fused 4-layer MLP: (Linear -> LeakyReLU(0.2)) x3 -> Linear."""

    def kernel(x_ref,
               w1_ref, b1_ref,
               w2_ref, b2_ref,
               w3_ref, b3_ref,
               w4_ref, b4_ref,
               o_ref):
        def leaky_relu(h):
            # max(h, 0.2*h) == LeakyReLU(0.2) since 0.2 > 0.
            return jnp.maximum(h, 0.2 * h)

        x = x_ref[...]  # bf16 (TB, in_features)

        h = jnp.dot(x, w1_ref[...], preferred_element_type=jnp.float32) + b1_ref[...]
        h = leaky_relu(h)
        # dropout(0.3) -> identity in eval mode

        h = jnp.dot(h.astype(w2_ref.dtype), w2_ref[...],
                    preferred_element_type=jnp.float32) + b2_ref[...]
        h = leaky_relu(h)

        h = jnp.dot(h.astype(w3_ref.dtype), w3_ref[...],
                    preferred_element_type=jnp.float32) + b3_ref[...]
        h = leaky_relu(h)

        if final_reduction:
            # out_features == 1: N=1 matmul wastes 127/255 MXU lanes; do it as a
            # lane-broadcast multiply + cross-lane (XLU) reduction instead.
            logit = jnp.sum(h * w4_ref[...], axis=-1, keepdims=True) + b4_ref[...]
        else:
            logit = jnp.dot(h.astype(w4_ref.dtype), w4_ref[...],
                            preferred_element_type=jnp.float32) + b4_ref[...]

        o_ref[...] = logit.astype(o_ref.dtype)

    return kernel


def discriminator_forward(x, params, *, batch_tile=1024):
    """x: (B, C, H, W) or (B, in_features). Returns f32 logits of shape (B, out_features)."""
    batch_size = x.shape[0]
    x2d = x.reshape(batch_size, -1)  # matches torch x.view(batch_size, -1)
    in_features = x2d.shape[1]

    (w1, b1), (w2, b2), (w3, b3), (w4, b4) = params
    out_features = w4.shape[1]

    # bf16 streaming input + matmul weights; biases stay f32.
    x_bf = x2d.astype(jnp.bfloat16)
    w1b = w1.astype(jnp.bfloat16)
    w2b = w2.astype(jnp.bfloat16)
    w3b = w3.astype(jnp.bfloat16)

    final_reduction = (out_features == 1)
    if final_reduction:
        # (1, 32) row, kept in f32 (tiny); used in the VPU/XLU reduction path.
        w4_arg = w4.reshape(1, -1).astype(jnp.float32)
    else:
        w4_arg = w4.astype(jnp.bfloat16)

    # Pad batch to a tile-able size (>= 16 rows: bf16 sublane packing).
    padded_b = max(16, ((batch_size + 15) // 16) * 16)
    tb = min(batch_tile, padded_b)
    padded_b = ((padded_b + tb - 1) // tb) * tb
    if padded_b != batch_size:
        x_bf = jnp.pad(x_bf, ((0, padded_b - batch_size), (0, 0)))

    grid = (padded_b // tb,)
    resident = lambda i: (0, 0)  # weights/biases: one DMA, VMEM-resident across grid

    out = pl.pallas_call(
        _make_discriminator_kernel(final_reduction),
        out_shape=jax.ShapeDtypeStruct((padded_b, out_features), jnp.float32),
        grid=grid,
        in_specs=[
            pl.BlockSpec((tb, in_features), lambda i: (i, 0)),   # streamed x tiles
            pl.BlockSpec(w1b.shape, resident),
            pl.BlockSpec(b1.shape, resident),
            pl.BlockSpec(w2b.shape, resident),
            pl.BlockSpec(b2.shape, resident),
            pl.BlockSpec(w3b.shape, resident),
            pl.BlockSpec(b3.shape, resident),
            pl.BlockSpec(w4_arg.shape, resident),
            pl.BlockSpec(b4.shape, resident),
        ],
        out_specs=pl.BlockSpec((tb, out_features), lambda i: (i, 0)),
        compiler_params=pltpu.CompilerParams(
            dimension_semantics=("parallel",),      # shard batch tiles across v7x TCs
            vmem_limit_bytes=32 * 1024 * 1024,      # explicit, portable to v7x 64 MiB
        ),
    )(x_bf, w1b, b1, w2b, b2, w3b, b3, w4_arg, b4)

    return out[:batch_size]


def init_discriminator_params(key, in_features, out_features):
    """Deterministic init mirroring nn.Linear defaults (uniform(-1/sqrt(fan_in), +))."""
    dims = [in_features, 128, 64, 32, out_features]
    params = []
    for i in range(4):
        fan_in, fan_out = dims[i], dims[i + 1]
        key, kw, kb = jax.random.split(key, 3)
        bound = 1.0 / (fan_in ** 0.5)
        # Stored as (fan_in, fan_out): transpose of PyTorch's (out, in) weight.
        w = jax.random.uniform(kw, (fan_in, fan_out), jnp.float32, -bound, bound)
        b = jax.random.uniform(kb, (1, fan_out), jnp.float32, -bound, bound)
        params.append((w, b))
    return params


def _reference_forward_f32(x, params):
    """Pure-JAX f32 reference (module semantics)."""
    h = x.reshape(x.shape[0], -1)
    for i, (w, b) in enumerate(params):
        h = h @ w + b
        if i < 3:
            h = jnp.where(h > 0, h, 0.2 * h)
    return h


def _reference_forward_bf16(x, params):
    """Pure-JAX reference matching the kernel's bf16-input / f32-accumulate numerics."""
    (w1, b1), (w2, b2), (w3, b3), (w4, b4) = params
    h = x.reshape(x.shape[0], -1).astype(jnp.bfloat16)
    for (w, b) in [(w1, b1), (w2, b2), (w3, b3)]:
        h = jnp.dot(h, w.astype(jnp.bfloat16),
                    preferred_element_type=jnp.float32) + b
        h = jnp.maximum(h, 0.2 * h)
        h = h.astype(jnp.bfloat16)
    h = h.astype(jnp.float32)
    if w4.shape[1] == 1:
        return jnp.sum(h * w4.reshape(1, -1), axis=-1, keepdims=True) + b4
    return jnp.dot(h.astype(jnp.bfloat16), w4.astype(jnp.bfloat16),
                   preferred_element_type=jnp.float32) + b4


if __name__ == "__main__":
    key = jax.random.PRNGKey(0)
    k_params, k_x1, k_x2 = jax.random.split(key, 3)

    # Small shapes consistent with the module: NCHW image input, flattened inside.
    batch, channels, spatial = 2, 1, 16
    in_features = channels * spatial * spatial   # 256
    out_features = 1

    params = init_discriminator_params(k_params, in_features, out_features)

    # Case 1: tiny batch (single grid step after padding).
    x = jax.random.normal(k_x1, (batch, channels, spatial, spatial), jnp.float32)
    logits = jax.block_until_ready(discriminator_forward(x, params))
    assert logits.shape == (batch, out_features)
    assert jnp.allclose(logits, _reference_forward_bf16(x, params), atol=1e-2, rtol=1e-2)
    assert jnp.allclose(logits, _reference_forward_f32(x, params), atol=5e-2, rtol=5e-2)

    # Case 2: batch not a multiple of the tile -> exercises padding + multi-step grid.
    batch2 = 37
    x2 = jax.random.normal(k_x2, (batch2, channels, spatial, spatial), jnp.float32)
    logits2 = jax.block_until_ready(discriminator_forward(x2, params, batch_tile=16))
    assert logits2.shape == (batch2, out_features)
    assert jnp.allclose(logits2, _reference_forward_bf16(x2, params), atol=1e-2, rtol=1e-2)
    assert jnp.allclose(logits2, _reference_forward_f32(x2, params), atol=5e-2, rtol=5e-2)

    print("KERNEL_OK")
</pallas_src>

<mosaic_0001>
module attributes {stable_mosaic.version = 11 : i64} {
  func.func @kernel(%arg0: i32, %arg1: memref<16x256xbf16, #tpu.memory_space<vmem>>, %arg2: memref<256x128xbf16, #tpu.memory_space<vmem>>, %arg3: memref<1x128xf32, #tpu.memory_space<vmem>>, %arg4: memref<128x64xbf16, #tpu.memory_space<vmem>>, %arg5: memref<1x64xf32, #tpu.memory_space<vmem>>, %arg6: memref<64x32xbf16, #tpu.memory_space<vmem>>, %arg7: memref<1x32xf32, #tpu.memory_space<vmem>>, %arg8: memref<1x32xf32, #tpu.memory_space<vmem>>, %arg9: memref<1x1xf32, #tpu.memory_space<vmem>>, %arg10: memref<16x1xf32, #tpu.memory_space<vmem>>) attributes {dimension_semantics = [#tpu.dimension_semantics<parallel>], iteration_bounds = array<i64: 1>, scalar_prefetch = 0 : i64, scratch_operands = 0 : i64, tpu.core_type = #tpu.core_type<tc>, window_params = [{transform_indices = @transform_0, window_bounds = array<i64: 16, 256>}, {pipeline_mode = #tpu.pipeline_mode<synchronous>, transform_indices = @transform_1, window_bounds = array<i64: 256, 128>}, {pipeline_mode = #tpu.pipeline_mode<synchronous>, transform_indices = @transform_2, window_bounds = array<i64: 1, 128>}, {pipeline_mode = #tpu.pipeline_mode<synchronous>, transform_indices = @transform_3, window_bounds = array<i64: 128, 64>}, {pipeline_mode = #tpu.pipeline_mode<synchronous>, transform_indices = @transform_4, window_bounds = array<i64: 1, 64>}, {pipeline_mode = #tpu.pipeline_mode<synchronous>, transform_indices = @transform_5, window_bounds = array<i64: 64, 32>}, {pipeline_mode = #tpu.pipeline_mode<synchronous>, transform_indices = @transform_6, window_bounds = array<i64: 1, 32>}, {pipeline_mode = #tpu.pipeline_mode<synchronous>, transform_indices = @transform_7, window_bounds = array<i64: 1, 32>}, {pipeline_mode = #tpu.pipeline_mode<synchronous>, transform_indices = @transform_8, window_bounds = array<i64: 1, 1>}, {transform_indices = @transform_9, window_bounds = array<i64: 16, 1>}]} {
    %c0 = arith.constant 0 : index
    %c0_0 = arith.constant 0 : index
    %0 = vector.load %arg1[%c0, %c0_0] : memref<16x256xbf16, #tpu.memory_space<vmem>>, vector<16x256xbf16>
    %c0_1 = arith.constant 0 : index
    %c0_2 = arith.constant 0 : index
    %1 = vector.load %arg2[%c0_1, %c0_2] : memref<256x128xbf16, #tpu.memory_space<vmem>>, vector<256x128xbf16>
    %cst = arith.constant dense<0.000000e+00> : vector<16x128xf32>
    %2 = tpu.matmul %0, %1, %cst {dimension_numbers = #tpu.dot_dimension_numbers<[1], [0], [0], [1], [0, 0, 1, 1], [], []>} : vector<16x256xbf16>, vector<256x128xbf16>, vector<16x128xf32> -> vector<16x128xf32>
    %c0_3 = arith.constant 0 : index
    %c0_4 = arith.constant 0 : index
    %3 = vector.load %arg3[%c0_3, %c0_4] : memref<1x128xf32, #tpu.memory_space<vmem>>, vector<1x128xf32>
    %4 = vector.broadcast %3 : vector<1x128xf32> to vector<16x128xf32>
    %5 = arith.addf %2, %4 : vector<16x128xf32>
    %cst_5 = arith.constant 2.000000e-01 : f32
    %6 = vector.broadcast %cst_5 : f32 to vector<16x128xf32>
    %7 = arith.mulf %6, %5 : vector<16x128xf32>
    %8 = arith.maximumf %5, %7 : vector<16x128xf32>
    %9 = arith.truncf %8 : vector<16x128xf32> to vector<16x128xbf16>
    %c0_6 = arith.constant 0 : index
    %c0_7 = arith.constant 0 : index
    %10 = vector.load %arg4[%c0_6, %c0_7] : memref<128x64xbf16, #tpu.memory_space<vmem>>, vector<128x64xbf16>
    %cst_8 = arith.constant dense<0.000000e+00> : vector<16x64xf32>
    %11 = tpu.matmul %9, %10, %cst_8 {dimension_numbers = #tpu.dot_dimension_numbers<[1], [0], [0], [1], [0, 0, 1, 1], [], []>} : vector<16x128xbf16>, vector<128x64xbf16>, vector<16x64xf32> -> vector<16x64xf32>
    %c0_9 = arith.constant 0 : index
    %c0_10 = arith.constant 0 : index
    %12 = vector.load %arg5[%c0_9, %c0_10] : memref<1x64xf32, #tpu.memory_space<vmem>>, vector<1x64xf32>
    %13 = vector.broadcast %12 : vector<1x64xf32> to vector<16x64xf32>
    %14 = arith.addf %11, %13 : vector<16x64xf32>
    %cst_11 = arith.constant 2.000000e-01 : f32
    %15 = vector.broadcast %cst_11 : f32 to vector<16x64xf32>
    %16 = arith.mulf %15, %14 : vector<16x64xf32>
    %17 = arith.maximumf %14, %16 : vector<16x64xf32>
    %18 = arith.truncf %17 : vector<16x64xf32> to vector<16x64xbf16>
    %c0_12 = arith.constant 0 : index
    %c0_13 = arith.constant 0 : index
    %19 = vector.load %arg6[%c0_12, %c0_13] : memref<64x32xbf16, #tpu.memory_space<vmem>>, vector<64x32xbf16>
    %cst_14 = arith.constant dense<0.000000e+00> : vector<16x32xf32>
    %20 = tpu.matmul %18, %19, %cst_14 {dimension_numbers = #tpu.dot_dimension_numbers<[1], [0], [0], [1], [0, 0, 1, 1], [], []>} : vector<16x64xbf16>, vector<64x32xbf16>, vector<16x32xf32> -> vector<16x32xf32>
    %c0_15 = arith.constant 0 : index
    %c0_16 = arith.constant 0 : index
    %21 = vector.load %arg7[%c0_15, %c0_16] : memref<1x32xf32, #tpu.memory_space<vmem>>, vector<1x32xf32>
    %22 = vector.broadcast %21 : vector<1x32xf32> to vector<16x32xf32>
    %23 = arith.addf %20, %22 : vector<16x32xf32>
    %cst_17 = arith.constant 2.000000e-01 : f32
    %24 = vector.broadcast %cst_17 : f32 to vector<16x32xf32>
    %25 = arith.mulf %24, %23 : vector<16x32xf32>
    %26 = arith.maximumf %23, %25 : vector<16x32xf32>
    %c0_18 = arith.constant 0 : index
    %c0_19 = arith.constant 0 : index
    %27 = vector.load %arg8[%c0_18, %c0_19] : memref<1x32xf32, #tpu.memory_space<vmem>>, vector<1x32xf32>
    %28 = vector.broadcast %27 : vector<1x32xf32> to vector<16x32xf32>
    %29 = arith.mulf %26, %28 : vector<16x32xf32>
    %cst_20 = arith.constant dense<0.000000e+00> : vector<16xf32>
    %30 = vector.multi_reduction <add>, %29, %cst_20 [1] : vector<16x32xf32> to vector<16xf32>
    %31 = vector.shape_cast %30 : vector<16xf32> to vector<16x1xf32>
    %c0_21 = arith.constant 0 : index
    %c0_22 = arith.constant 0 : index
    %32 = vector.load %arg9[%c0_21, %c0_22] : memref<1x1xf32, #tpu.memory_space<vmem>>, vector<1x1xf32>
    %33 = vector.broadcast %32 : vector<1x1xf32> to vector<16x1xf32>
    %34 = arith.addf %31, %33 : vector<16x1xf32>
    %c0_23 = arith.constant 0 : index
    %c0_24 = arith.constant 0 : index
    %35 = vector.load %arg10[%c0_23, %c0_24] : memref<16x1xf32, #tpu.memory_space<vmem>>, vector<16x1xf32>
    tpu.vector_store %arg10[%c0_23, %c0_24], %34 {strides = array<i32>} : memref<16x1xf32, #tpu.memory_space<vmem>>, vector<16x1xf32>,
    return
  }
  func.func @transform_0(%arg0: i32) -> (i32, i32) {
    %c0_i32 = arith.constant 0 : i32
    %c0_i32_0 = arith.constant 0 : i32
    return %arg0, %c0_i32 : i32, i32
  }
  func.func @transform_1(%arg0: i32) -> (i32, i32) {
    %c0_i32 = arith.constant 0 : i32
    %c0_i32_0 = arith.constant 0 : i32
    %c0_i32_1 = arith.constant 0 : i32
    return %c0_i32, %c0_i32_0 : i32, i32
  }
  func.func @transform_2(%arg0: i32) -> (i32, i32) {
    %c0_i32 = arith.constant 0 : i32
    %c0_i32_0 = arith.constant 0 : i32
    %c0_i32_1 = arith.constant 0 : i32
    return %c0_i32, %c0_i32_0 : i32, i32
  }
  func.func @transform_3(%arg0: i32) -> (i32, i32) {
    %c0_i32 = arith.constant 0 : i32
    %c0_i32_0 = arith.constant 0 : i32
    %c0_i32_1 = arith.constant 0 : i32
    return %c0_i32, %c0_i32_0 : i32, i32
  }
  func.func @transform_4(%arg0: i32) -> (i32, i32) {
    %c0_i32 = arith.constant 0 : i32
    %c0_i32_0 = arith.constant 0 : i32
    %c0_i32_1 = arith.constant 0 : i32
    return %c0_i32, %c0_i32_0 : i32, i32
  }
  func.func @transform_5(%arg0: i32) -> (i32, i32) {
    %c0_i32 = arith.constant 0 : i32
    %c0_i32_0 = arith.constant 0 : i32
    %c0_i32_1 = arith.constant 0 : i32
    return %c0_i32, %c0_i32_0 : i32, i32
  }
  func.func @transform_6(%arg0: i32) -> (i32, i32) {
    %c0_i32 = arith.constant 0 : i32
    %c0_i32_0 = arith.constant 0 : i32
    %c0_i32_1 = arith.constant 0 : i32
    return %c0_i32, %c0_i32_0 : i32, i32
  }
  func.func @transform_7(%arg0: i32) -> (i32, i32) {
    %c0_i32 = arith.constant 0 : i32
    %c0_i32_0 = arith.constant 0 : i32
    %c0_i32_1 = arith.constant 0 : i32
    return %c0_i32, %c0_i32_0 : i32, i32
  }
  func.func @transform_8(%arg0: i32) -> (i32, i32) {
    %c0_i32 = arith.constant 0 : i32
    %c0_i32_0 = arith.constant 0 : i32
    %c0_i32_1 = arith.constant 0 : i32
    return %c0_i32, %c0_i32_0 : i32, i32
  }
  func.func @transform_9(%arg0: i32) -> (i32, i32) {
    %c0_i32 = arith.constant 0 : i32
    %c0_i32_0 = arith.constant 0 : i32
    return %arg0, %c0_i32 : i32, i32
  }
}

</mosaic_0001>

<llo_original>
// kernel: tpu_custom_call.1
$region0: #{tpu_custom_call.1}
  #allocation0 [shape = 'u32[]', space=smem, size = 0x4, offset = 0x4, fixed_abs, tag = 'smem constant byte address 0x4 - core index']
  #allocation1 [shape = 'u32[144,128]{1,0:T(1,128)}', space=vmem, size = 0x12000, scoped, tag = 'internal scratch']
  #allocation2 [shape = 'f32[1,1]{1,0:T(1,128)S(1)}', space=vmem, size = 0x200, scoped, tag = 'scoped memory for tpu_custom_call.1']
  %s0 = inlined_call_operand.vmem [shape: bf16[16,256], index: 0, kind: input, shape index: {}]
  %s1 = inlined_call_operand.vmem [shape: bf16[256,128], index: 1, kind: input, shape index: {}]
  %s2 = inlined_call_operand.vmem [shape: f32[1,128], index: 2, kind: input, shape index: {}]
  %s3 = inlined_call_operand.vmem [shape: bf16[128,64], index: 3, kind: input, shape index: {}]
  %s4 = inlined_call_operand.vmem [shape: f32[1,64], index: 4, kind: input, shape index: {}]
  %s5 = inlined_call_operand.vmem [shape: bf16[64,32], index: 5, kind: input, shape index: {}]
  %s6 = inlined_call_operand.vmem [shape: f32[1,32], index: 6, kind: input, shape index: {}]
  %s7 = inlined_call_operand.vmem [shape: f32[1,32], index: 7, kind: input, shape index: {}]
  %s8 = inlined_call_operand.<no memory space> [shape: f32[1,1], index: 8, kind: input, shape index: {}]
  %s9 = inlined_call_operand.vmem [shape: f32[16,1], index: 9, kind: output, shape index: {}]
  %s10 = sld [smem:[#allocation0]]
  $region46: #{tpu_custom_call.1} parent=0
    _
  %s12 = ssub.s32 1, %s10
  %s13 = scalar_select 0, %s12, %s10
  %v14 = vstv %s8
  %15 = vst [vmem:[#allocation2] sm:$0x1] %v14
  // Predicated region
  $region2: #{tpu_custom_call.1} parent=0 // pred_check
    _
  $region3: #{tpu_custom_call.1} parent=0 // pred_check_branch
    %17 = sbr.rel (0) target = $region5
  $region4: #{tpu_custom_call.1} parent=0 // pred_region
    _
  $region5: #{tpu_custom_call.1} parent=0 // pred_fallthru
    _
  // Predicated region
  $region6: #{tpu_custom_call.1} parent=0 // pred_check
    _
  $region7: #{tpu_custom_call.1} parent=0 // pred_check_branch
    %19 = sbr.rel (0) target = $region9
  $region8: #{tpu_custom_call.1} parent=0 // pred_region
    _
  $region9: #{tpu_custom_call.1} parent=0 // pred_fallthru
    _
  // Predicated region
  $region10: #{tpu_custom_call.1} parent=0 // pred_check
    _
  $region11: #{tpu_custom_call.1} parent=0 // pred_check_branch
    %21 = sbr.rel (0) target = $region13
  $region12: #{tpu_custom_call.1} parent=0 // pred_region
    _
  $region13: #{tpu_custom_call.1} parent=0 // pred_fallthru
    _
  // Predicated region
  $region14: #{tpu_custom_call.1} parent=0 // pred_check
    _
  $region15: #{tpu_custom_call.1} parent=0 // pred_check_branch
    %23 = sbr.rel (0) target = $region17
  $region16: #{tpu_custom_call.1} parent=0 // pred_region
    _
  $region17: #{tpu_custom_call.1} parent=0 // pred_fallthru
    _
  // Predicated region
  $region18: #{tpu_custom_call.1} parent=0 // pred_check
    _
  $region19: #{tpu_custom_call.1} parent=0 // pred_check_branch
    %25 = sbr.rel (0) target = $region21
  $region20: #{tpu_custom_call.1} parent=0 // pred_region
    _
  $region21: #{tpu_custom_call.1} parent=0 // pred_fallthru
    _
  // Predicated region
  $region22: #{tpu_custom_call.1} parent=0 // pred_check
    _
  $region23: #{tpu_custom_call.1} parent=0 // pred_check_branch
    %27 = sbr.rel (0) target = $region25
  $region24: #{tpu_custom_call.1} parent=0 // pred_region
    _
  $region25: #{tpu_custom_call.1} parent=0 // pred_fallthru
    _
  // Predicated region
  $region26: #{tpu_custom_call.1} parent=0 // pred_check
    _
  $region27: #{tpu_custom_call.1} parent=0 // pred_check_branch
    %29 = sbr.rel (0) target = $region29
  $region28: #{tpu_custom_call.1} parent=0 // pred_region
    _
  $region29: #{tpu_custom_call.1} parent=0 // pred_fallthru
    _
  // Predicated region
  $region30: #{tpu_custom_call.1} parent=0 // pred_check
    _
  $region31: #{tpu_custom_call.1} parent=0 // pred_check_branch
    %31 = sbr.rel (0) target = $region33
  $region32: #{tpu_custom_call.1} parent=0 // pred_region
    _
  $region33: #{tpu_custom_call.1} parent=0 // pred_fallthru
    _
  // Predicated region
  $region34: #{tpu_custom_call.1} parent=0 // pred_check
    _
  $region35: #{tpu_custom_call.1} parent=0 // pred_check_branch
    %33 = sbr.rel (0) target = $region37
  $region36: #{tpu_custom_call.1} parent=0 // pred_region
    _
  $region37: #{tpu_custom_call.1} parent=0 // pred_fallthru
    _
  %v35 = vld [vmem:[%s0] sm:$0xff]
  %v36 = vld [vmem:[%s0 + $0x8] sm:$0xff]
  %v37 = vld [vmem:[%s1] sm:$0xf]
  %v38 = vld [vmem:[%s1 + $0x4] sm:$0xf]
  %v39 = vld [vmem:[%s1 + $0x8] sm:$0xf]
  %v40 = vld [vmem:[%s1 + $0xc] sm:$0xf]
  %v41 = vld [vmem:[%s1 + $0x10] sm:$0xf]
  %v42 = vld [vmem:[%s1 + $0x14] sm:$0xf]
  %v43 = vld [vmem:[%s1 + $0x18] sm:$0xf]
  %v44 = vld [vmem:[%s1 + $0x1c] sm:$0xf]
  %v45 = vld [vmem:[%s1 + $0x20] sm:$0xf]
  %v46 = vld [vmem:[%s1 + $0x24] sm:$0xf]
  %v47 = vld [vmem:[%s1 + $0x28] sm:$0xf]
  %v48 = vld [vmem:[%s1 + $0x2c] sm:$0xf]
  %v49 = vld [vmem:[%s1 + $0x30] sm:$0xf]
  %v50 = vld [vmem:[%s1 + $0x34] sm:$0xf]
  %v51 = vld [vmem:[%s1 + $0x38] sm:$0xf]
  %v52 = vld [vmem:[%s1 + $0x3c] sm:$0xf]
  %v53 = vld [vmem:[%s1 + $0x40] sm:$0xf]
  %v54 = vld [vmem:[%s1 + $0x44] sm:$0xf]
  %v55 = vld [vmem:[%s1 + $0x48] sm:$0xf]
  %v56 = vld [vmem:[%s1 + $0x4c] sm:$0xf]
  %v57 = vld [vmem:[%s1 + $0x50] sm:$0xf]
  %v58 = vld [vmem:[%s1 + $0x54] sm:$0xf]
  %v59 = vld [vmem:[%s1 + $0x58] sm:$0xf]
  %v60 = vld [vmem:[%s1 + $0x5c] sm:$0xf]
  %v61 = vld [vmem:[%s1 + $0x60] sm:$0xf]
  %v62 = vld [vmem:[%s1 + $0x64] sm:$0xf]
  %v63 = vld [vmem:[%s1 + $0x68] sm:$0xf]
  %v64 = vld [vmem:[%s1 + $0x6c] sm:$0xf]
  %v65 = vld [vmem:[%s1 + $0x70] sm:$0xf]
  %v66 = vld [vmem:[%s1 + $0x74] sm:$0xf]
  %v67 = vld [vmem:[%s1 + $0x78] sm:$0xf]
  %v68 = vld [vmem:[%s1 + $0x7c] sm:$0xf]
  %v69 = vld [vmem:[%s2] sm:$0x1]
  %v71 = vlaneseq
  %v72 = vshrl.u32 %v71, 7
  %v73 = vsub.s32 0, %v72
  %v74 = vrot.slane %v69, %v73
  %v78 = vunpack.c.l.b16 %v35
  %v79 = vunpack.c.h.b16 %v35
  %v80 = vunpack.c.l.b16 %v36
  %v81 = vunpack.c.h.b16 %v36
  %v82 = vpack.c.b16 %v80, %v78
  %v83 = vpack.c.b16 %v81, %v79
  %v118 = vunpack.c.l.b16 %v37
  %v119 = vunpack.c.l.b16 %v38
  %v120 = vunpack.c.l.b16 %v39
  %v121 = vunpack.c.l.b16 %v40
  %v122 = vunpack.c.l.b16 %v41
  %v123 = vunpack.c.l.b16 %v42
  %v124 = vunpack.c.l.b16 %v43
  %v125 = vunpack.c.l.b16 %v44
  %v126 = vunpack.c.l.b16 %v45
  %v127 = vunpack.c.l.b16 %v46
  %v128 = vunpack.c.l.b16 %v47
  %v129 = vunpack.c.l.b16 %v48
  %v130 = vunpack.c.l.b16 %v49
  %v131 = vunpack.c.l.b16 %v50
  %v132 = vunpack.c.l.b16 %v51
  %v133 = vunpack.c.l.b16 %v52
  %v134 = vunpack.c.l.b16 %v53
  %v135 = vunpack.c.l.b16 %v54
  %v136 = vunpack.c.l.b16 %v55
  %v137 = vunpack.c.l.b16 %v56
  %v138 = vunpack.c.l.b16 %v57
  %v139 = vunpack.c.l.b16 %v58
  %v140 = vunpack.c.l.b16 %v59
  %v141 = vunpack.c.l.b16 %v60
  %v142 = vunpack.c.l.b16 %v61
  %v143 = vunpack.c.l.b16 %v62
  %v144 = vunpack.c.l.b16 %v63
  %v145 = vunpack.c.l.b16 %v64
  %v146 = vunpack.c.l.b16 %v65
  %v147 = vunpack.c.l.b16 %v66
  %v148 = vunpack.c.l.b16 %v67
  %v149 = vunpack.c.l.b16 %v68
  %v150 = vpack.c.b16 %v119, %v118
  %v151 = vpack.c.b16 %v121, %v120
  %v152 = vpack.c.b16 %v123, %v122
  %v153 = vpack.c.b16 %v125, %v124
  %v154 = vpack.c.b16 %v127, %v126
  %v155 = vpack.c.b16 %v129, %v128
  %v156 = vpack.c.b16 %v131, %v130
  %v157 = vpack.c.b16 %v133, %v132
  %v158 = vpack.c.b16 %v135, %v134
  %v159 = vpack.c.b16 %v137, %v136
  %v160 = vpack.c.b16 %v139, %v138
  %v161 = vpack.c.b16 %v141, %v140
  %v162 = vpack.c.b16 %v143, %v142
  %v163 = vpack.c.b16 %v145, %v144
  %v164 = vpack.c.b16 %v147, %v146
  %v165 = vpack.c.b16 %v149, %v148
  %182 = vmatprep.subr.bf16.mxu0 0
  %183 = vmatpush1.bf16.msra.mxu0 %v150
  %184 = vmatprep.subr.bf16.mxu0 0
  %185 = vmatpush1.bf16.msra.mxu0 %v151
  %186 = vmatprep.subr.bf16.mxu0 0
  %187 = vmatpush1.bf16.msra.mxu0 %v152
  %188 = vmatprep.subr.bf16.mxu0 0
  %189 = vmatpush1.bf16.msra.mxu0 %v153
  %190 = vmatprep.subr.bf16.mxu0 0
  %191 = vmatpush1.bf16.msra.mxu0 %v154
  %192 = vmatprep.subr.bf16.mxu0 0
  %193 = vmatpush1.bf16.msra.mxu0 %v155
  %194 = vmatprep.subr.bf16.mxu0 0
  %195 = vmatpush1.bf16.msra.mxu0 %v156
  %196 = vmatprep.subr.bf16.mxu0 0
  %197 = vmatpush1.bf16.msra.mxu0 %v157
  %198 = vmatprep.subr.bf16.mxu0 0
  %199 = vmatpush1.bf16.msra.mxu0 %v158
  %200 = vmatprep.subr.bf16.mxu0 0
  %201 = vmatpush1.bf16.msra.mxu0 %v159
  %202 = vmatprep.subr.bf16.mxu0 0
  %203 = vmatpush1.bf16.msra.mxu0 %v160
  %204 = vmatprep.subr.bf16.mxu0 0
  %205 = vmatpush1.bf16.msra.mxu0 %v161
  %206 = vmatprep.subr.bf16.mxu0 0
  %207 = vmatpush1.bf16.msra.mxu0 %v162
  %208 = vmatprep.subr.bf16.mxu0 0
  %209 = vmatpush1.bf16.msra.mxu0 %v163
  %210 = vmatprep.subr.bf16.mxu0 0
  %211 = vmatpush1.bf16.msra.mxu0 %v164
  %212 = vmatprep.subr.bf16.mxu0 0
  %213 = vmatpush1.bf16.msra.mxu0 %v165
  %214 = vmatprep.mubr.bf16.mxu0 %v83
  %215 = vmatmul.mubr.bf16.gmra.mrb[0].mxu0 %v82
  %v216 = vpop.f32.mrb[0].mxu0
  %v217 = vadd.f32 %v74, %v216
  %v218 = vpop.f32.mrb[0].mxu0
  %v219 = vpop.f32.mrb[0].mxu0
  %v220 = vadd.f32 %v74, %v219
  %v221 = vpop.f32.mrb[0].mxu0
  %222 = vdwg.mxu0
  %v223 = vmul.f32 %v217, 0.2
  %v224 = vmul.f32 %v220, 0.2
  %v225 = vmax.f32 %v217, %v223
  %v226 = vmax.f32 %v220, %v224
  %v227 = vpack.c.bf16 %v226, %v225
  %v228 = vld [vmem:[%s3] sm:$0xf]
  %v229 = vld [vmem:[%s3 + $0x4] sm:$0xf]
  %v230 = vld [vmem:[%s3 + $0x8] sm:$0xf]
  %v231 = vld [vmem:[%s3 + $0xc] sm:$0xf]
  %v232 = vld [vmem:[%s3 + $0x10] sm:$0xf]
  %v233 = vld [vmem:[%s3 + $0x14] sm:$0xf]
  %v234 = vld [vmem:[%s3 + $0x18] sm:$0xf]
  %v235 = vld [vmem:[%s3 + $0x1c] sm:$0xf]
  %v236 = vld [vmem:[%s3 + $0x20] sm:$0xf]
  %v237 = vld [vmem:[%s3 + $0x24] sm:$0xf]
  %v238 = vld [vmem:[%s3 + $0x28] sm:$0xf]
  %v239 = vld [vmem:[%s3 + $0x2c] sm:$0xf]
  %v240 = vld [vmem:[%s3 + $0x30] sm:$0xf]
  %v241 = vld [vmem:[%s3 + $0x34] sm:$0xf]
  %v242 = vld [vmem:[%s3 + $0x38] sm:$0xf]
  %v243 = vld [vmem:[%s3 + $0x3c] sm:$0xf]
  %v244 = vld [vmem:[%s4] sm:$0x1]
  %v246 = vlaneseq
  %v247 = vshrl.u32 %v246, 7
  %v248 = vsub.s32 0, %v247
  %v249 = vrot.slane %v244, %v248
  %v267 = vunpack.c.l.b16 %v228
  %v268 = vunpack.c.l.b16 %v229
  %v269 = vunpack.c.l.b16 %v230
  %v270 = vunpack.c.l.b16 %v231
  %v271 = vunpack.c.l.b16 %v232
  %v272 = vunpack.c.l.b16 %v233
  %v273 = vunpack.c.l.b16 %v234
  %v274 = vunpack.c.l.b16 %v235
  %v275 = vunpack.c.l.b16 %v236
  %v276 = vunpack.c.l.b16 %v237
  %v277 = vunpack.c.l.b16 %v238
  %v278 = vunpack.c.l.b16 %v239
  %v279 = vunpack.c.l.b16 %v240
  %v280 = vunpack.c.l.b16 %v241
  %v281 = vunpack.c.l.b16 %v242
  %v282 = vunpack.c.l.b16 %v243
  %v283 = vpack.c.b16 %v268, %v267
  %v284 = vpack.c.b16 %v270, %v269
  %v285 = vpack.c.b16 %v272, %v271
  %v286 = vpack.c.b16 %v274, %v273
  %v287 = vpack.c.b16 %v276, %v275
  %v288 = vpack.c.b16 %v278, %v277
  %v289 = vpack.c.b16 %v280, %v279
  %v290 = vpack.c.b16 %v282, %v281
  %299 = vmatprep.subr.bf16.mxu0 0
  %300 = vmatpush1.bf16.msra.mxu0 %v283
  %301 = vmatprep.subr.bf16.mxu0 0
  %302 = vmatpush1.bf16.msra.mxu0 %v284
  %303 = vmatprep.subr.bf16.mxu0 0
  %304 = vmatpush1.bf16.msra.mxu0 %v285
  %305 = vmatprep.subr.bf16.mxu0 0
  %306 = vmatpush1.bf16.msra.mxu0 %v286
  %307 = vmatprep.subr.bf16.mxu0 0
  %308 = vmatpush1.bf16.msra.mxu0 %v287
  %309 = vmatprep.subr.bf16.mxu0 0
  %310 = vmatpush1.bf16.msra.mxu0 %v288
  %311 = vmatprep.subr.bf16.mxu0 0
  %312 = vmatpush1.bf16.msra.mxu0 %v289
  %313 = vmatprep.subr.bf16.mxu0 0
  %314 = vmatpush1.bf16.msra.mxu0 %v290
  %315 = vmatprep.subr.bf16.mxu0 0
  %316 = vmatpush1.bf16.msra.mxu0 0
  %317 = vmatprep.subr.bf16.mxu0 0
  %318 = vmatpush1.bf16.msra.mxu0 0
  %319 = vmatprep.subr.bf16.mxu0 0
  %320 = vmatpush1.bf16.msra.mxu0 0
  %321 = vmatprep.subr.bf16.mxu0 0
  %322 = vmatpush1.bf16.msra.mxu0 0
  %323 = vmatprep.subr.bf16.mxu0 0
  %324 = vmatpush1.bf16.msra.mxu0 0
  %325 = vmatprep.subr.bf16.mxu0 0
  %326 = vmatpush1.bf16.msra.mxu0 0
  %327 = vmatprep.subr.bf16.mxu0 0
  %328 = vmatpush1.bf16.msra.mxu0 0
  %329 = vmatprep.subr.bf16.mxu0 0
  %330 = vmatpush1.bf16.msra.mxu0 0
  %331 = vmatprep.mubr.bf16.mxu0 0
  %332 = vmatmul.mubr.bf16.gmra.mrb[0].mxu0 %v227
  %v333 = vpop.f32.mrb[0].mxu0
  %v334 = vadd.f32 %v249, %v333
  %v335 = vpop.f32.mrb[0].mxu0
  %v336 = vpop.f32.mrb[0].mxu0
  %v337 = vadd.f32 %v249, %v336
  %v338 = vpop.f32.mrb[0].mxu0
  %339 = vdwg.mxu0
  %v340 = vmul.f32 %v334, 0.2
  %v341 = vmul.f32 %v337, 0.2
  %v342 = vmax.f32 %v334, %v340
  %v343 = vmax.f32 %v337, %v341
  %v344 = vpack.c.bf16 %v343, %v342
  %v345 = vld [vmem:[%s5] sm:$0xf]
  %v346 = vld [vmem:[%s5 + $0x4] sm:$0xf]
  %v347 = vld [vmem:[%s5 + $0x8] sm:$0xf]
  %v348 = vld [vmem:[%s5 + $0xc] sm:$0xf]
  %v349 = vld [vmem:[%s5 + $0x10] sm:$0xf]
  %v350 = vld [vmem:[%s5 + $0x14] sm:$0xf]
  %v351 = vld [vmem:[%s5 + $0x18] sm:$0xf]
  %v352 = vld [vmem:[%s5 + $0x1c] sm:$0xf]
  %v353 = vld [vmem:[%s6] sm:$0x1]
  %v355 = vlaneseq
  %v356 = vshrl.u32 %v355, 7
  %v357 = vsub.s32 0, %v356
  %v358 = vrot.slane %v353, %v357
  %v368 = vunpack.c.l.b16 %v345
  %v369 = vunpack.c.l.b16 %v346
  %v370 = vunpack.c.l.b16 %v347
  %v371 = vunpack.c.l.b16 %v348
  %v372 = vunpack.c.l.b16 %v349
  %v373 = vunpack.c.l.b16 %v350
  %v374 = vunpack.c.l.b16 %v351
  %v375 = vunpack.c.l.b16 %v352
  %v376 = vpack.c.b16 %v369, %v368
  %v377 = vpack.c.b16 %v371, %v370
  %v378 = vpack.c.b16 %v373, %v372
  %v379 = vpack.c.b16 %v375, %v374
  %vm384 = vcmask 523264
  %v386 = vsel %vm384, %v344, 0
  %388 = vmatprep.subr.bf16.mxu0 0
  %389 = vmatpush1.bf16.msra.mxu0 %v376
  %390 = vmatprep.subr.bf16.mxu0 0
  %391 = vmatpush1.bf16.msra.mxu0 %v377
  %392 = vmatprep.subr.bf16.mxu0 0
  %393 = vmatpush1.bf16.msra.mxu0 %v378
  %394 = vmatprep.subr.bf16.mxu0 0
  %395 = vmatpush1.bf16.msra.mxu0 %v379
  %396 = vmatprep.subr.bf16.mxu0 0
  %397 = vmatpush1.bf16.msra.mxu0 0
  %398 = vmatprep.subr.bf16.mxu0 0
  %399 = vmatpush1.bf16.msra.mxu0 0
  %400 = vmatprep.subr.bf16.mxu0 0
  %401 = vmatpush1.bf16.msra.mxu0 0
  %402 = vmatprep.subr.bf16.mxu0 0
  %403 = vmatpush1.bf16.msra.mxu0 0
  %404 = vmatprep.subr.bf16.mxu0 0
  %405 = vmatpush1.bf16.msra.mxu0 0
  %406 = vmatprep.subr.bf16.mxu0 0
  %407 = vmatpush1.bf16.msra.mxu0 0
  %408 = vmatprep.subr.bf16.mxu0 0
  %409 = vmatpush1.bf16.msra.mxu0 0
  %410 = vmatprep.subr.bf16.mxu0 0
  %411 = vmatpush1.bf16.msra.mxu0 0
  %412 = vmatprep.subr.bf16.mxu0 0
  %413 = vmatpush1.bf16.msra.mxu0 0
  %414 = vmatprep.subr.bf16.mxu0 0
  %415 = vmatpush1.bf16.msra.mxu0 0
  %416 = vmatprep.subr.bf16.mxu0 0
  %417 = vmatpush1.bf16.msra.mxu0 0
  %418 = vmatprep.subr.bf16.mxu0 0
  %419 = vmatpush1.bf16.msra.mxu0 0
  %420 = vmatprep.mubr.bf16.mxu0 0
  %421 = vmatmul.mubr.bf16.gmra.mrb[0].mxu0 %v386
  %v422 = vpop.f32.mrb[0].mxu0
  %v423 = vadd.f32 %v358, %v422
  %v424 = vpop.f32.mrb[0].mxu0
  %v425 = vpop.f32.mrb[0].mxu0
  %v426 = vadd.f32 %v358, %v425
  %v427 = vpop.f32.mrb[0].mxu0
  %428 = vdwg.mxu0
  %v429 = vmul.f32 %v423, 0.2
  %v430 = vmul.f32 %v426, 0.2
  %v431 = vmax.f32 %v423, %v429
  %v432 = vmax.f32 %v426, %v430
  %v433 = vld [vmem:[%s7] sm:$0x1]
  %v435 = vlaneseq
  %v436 = vshrl.u32 %v435, 7
  %v437 = vsub.s32 0, %v436
  %v438 = vrot.slane %v433, %v437
  %v440 = vmul.f32 %v431, %v438
  %v441 = vmul.f32 %v432, %v438
  %vm442 = vcmask 261120
  %v443 = vsel %vm442, %v440, 0.0
  %444 = vadd.xlane.f32.xlu0 %v443
  %v445 = vpop.xlane.xlu0 %444
  %v446 = vsel %vm442, %v441, 0.0
  %447 = vadd.xlane.f32.xlu0 %v446
  %v448 = vpop.xlane.xlu0 %447
  %v449 = vld [vmem:[#allocation2] sm:$0x1]
  %v451 = vlaneseq
  %v452 = vshrl.u32 %v451, 7
  %v453 = vsub.s32 0, %v452
  %v454 = vrot.slane %v449, %v453
  %v456 = vadd.f32 %v445, %v454
  %v457 = vadd.f32 %v448, %v454
  %vm458 = vcmask 7168
  %459 = vst.msk [vmem:[%s9] sm:$0xff] %vm458, %v456
  %460 = vst.msk [vmem:[%s9 + $0x8] sm:$0xff] %vm458, %v457
  // Predicated region
  $region38: #{tpu_custom_call.1} parent=0 // pred_check
    _
  $region39: #{tpu_custom_call.1} parent=0 // pred_check_branch
    %462 = sbr.rel (0) target = $region41
  $region40: #{tpu_custom_call.1} parent=0 // pred_region
    _
  $region41: #{tpu_custom_call.1} parent=0 // pred_fallthru
    _
  // Predicated region
  $region42: #{tpu_custom_call.1} parent=0 // pred_check
    _
  $region43: #{tpu_custom_call.1} parent=0 // pred_check_branch
    %464 = sbr.rel (0) target = $region45
  $region44: #{tpu_custom_call.1} parent=0 // pred_region
    _
  $region45: #{tpu_custom_call.1} parent=0 // pred_fallthru
    _

</llo_original>
